<compile_context>
chip_gen: v6e
topology: v6e:2x2x1
jax: 0.10.0
libtpu: 0.0.40
codegen_flags: <defaults>
</compile_context>

<pallas_src>
import jax
import jax.numpy as jnp
from jax.experimental import pallas as pl
from jax.experimental.pallas import tpu as pltpu


LANE = 128   # lane width of a vreg (last-dim granularity in VMEM)
SUBLANE = 8  # sublane count (second-to-last dim granularity)


def _round_up(x, m):
    return ((x + m - 1) // m) * m


def _vmem_capacity_bytes():
    """Generation-aware VMEM capacity; conservative v7x per-TC fallback."""
    try:
        return int(pltpu.get_tpu_info().vmem_capacity_bytes)
    except Exception:
        return 64 * 1024 * 1024


def _mlp_kernel(alpha_ref, x_ref, w1_ref, b1_ref, w2_ref, b2_ref, o_ref):
    # fc1: cast x to bf16 only at the MXU input; accumulate in f32.
    x = x_ref[...].astype(jnp.bfloat16)
    h = jnp.dot(x, w1_ref[...], preferred_element_type=jnp.float32)
    h = h + b1_ref[...]                       # b1 is (1, F) -> broadcast over batch
    # PReLU (single shared parameter, PyTorch default num_parameters=1).
    a = alpha_ref[0]                          # scalar read from SMEM
    h = jnp.where(h > 0, h, a * h)
    # Dropout(0.5) -> identity in eval mode.
    # fc2: bf16 MXU inputs, f32 accumulation.
    out = jnp.dot(h.astype(jnp.bfloat16), w2_ref[...],
                  preferred_element_type=jnp.float32)
    out = out + b2_ref[...]
    o_ref[...] = out.astype(o_ref.dtype)


def prepare_params(w1, b1, w2, b2):
    """One-time parameter prep: cast weights to bf16 (halves resident VMEM /
    HBM traffic) and reshape biases to 2-D f32 rows. Do this once and reuse
    across calls so the per-call hot path has no weight-side read+write pass."""
    return (w1.astype(jnp.bfloat16),
            b1.astype(jnp.float32).reshape(1, -1),
            w2.astype(jnp.bfloat16),
            b2.astype(jnp.float32).reshape(1, -1))


def target_embedding_net(x, alpha, params, *, tb_max=1024, min_batch_tiles=2):
    """x: [B, input_size] (f32); params from prepare_params(). Returns [B, output_dim]."""
    w1_bf16, b1_2d, w2_bf16, b2_2d = params
    B, F = x.shape
    D = w2_bf16.shape[1]
    out_dtype = x.dtype

    # --- Batch tiling ------------------------------------------------------
    # Enough tiles to respect tb_max; force >=2 tiles (v7x megacore) when the
    # batch is big enough for each tile to be at least one sublane group.
    n_tiles = max(pl.cdiv(B, tb_max), 1)
    if B >= 2 * SUBLANE:
        n_tiles = max(n_tiles, min_batch_tiles)
    TB = _round_up(pl.cdiv(B, n_tiles), SUBLANE)   # minimizes last-tile waste
    Bp = _round_up(B, TB)
    grid = (Bp // TB,)

    # Only batch rows (if any) get padded; feature dims stay unpadded in HBM.
    xp = x if Bp == B else jnp.pad(x, ((0, Bp - B), (0, 0)))
    alpha_s = jnp.asarray(alpha, jnp.float32).reshape((1,))

    # --- VMEM budget (accounts for the (8,128) VMEM layout padding) --------
    F32, BF16 = 4, 2
    Fl, Dl = _round_up(F, LANE), _round_up(D, LANE)
    Fs = _round_up(F, SUBLANE)
    # NOTE: weights are grid-invariant (constant index_map) so Mosaic keeps them
    # resident; the budget still counts them x2 (default double buffering).
    vmem_bytes = (
        2 * TB * Fl * F32                      # x tiles (double-buffered, f32)
        + 2 * TB * Dl * F32                    # out tiles (double-buffered)
        + 2 * (Fs * Fl + Fs * Dl) * BF16       # W1, W2 (bf16, conservatively x2)
        + 2 * SUBLANE * (Fl + Dl) * F32        # b1, b2 (sublane-padded)
        + TB * Fl * (F32 + 2 * BF16)           # h (f32) + bf16 copies of x and h
        + TB * Dl * F32                        # fc2 f32 result before store
        + (4 << 20)                            # headroom for Mosaic scratch
    )
    vmem_limit = int(min(vmem_bytes, _vmem_capacity_bytes()))

    cost = pl.CostEstimate(
        flops=2 * B * F * F + 2 * B * F * D + 4 * B * (F + D),
        transcendentals=0,
        bytes_accessed=(B * F * F32 + F * F * BF16 + F * D * BF16
                        + (F + D) * F32 + B * D * F32),
    )

    out_padded = pl.pallas_call(
        _mlp_kernel,
        out_shape=jax.ShapeDtypeStruct((Bp, D), out_dtype),
        grid_spec=pltpu.PrefetchScalarGridSpec(
            num_scalar_prefetch=0,
            grid=grid,
            in_specs=[
                # PReLU alpha: single scalar, lives in SMEM.
                pl.BlockSpec(memory_space=pltpu.MemorySpace.SMEM),
                # x: batch-tiled, full (unpadded) feature dim -> one HBM burst.
                pl.BlockSpec((TB, F), lambda i: (i, 0)),
                # Weights / biases: grid-invariant -> VMEM-resident across steps.
                pl.BlockSpec((F, F), lambda i: (0, 0)),   # W1 (bf16)
                pl.BlockSpec((1, F), lambda i: (0, 0)),   # b1 (f32)
                pl.BlockSpec((F, D), lambda i: (0, 0)),   # W2 (bf16)
                pl.BlockSpec((1, D), lambda i: (0, 0)),   # b2 (f32)
            ],
            out_specs=pl.BlockSpec((TB, D), lambda i: (i, 0)),
        ),
        compiler_params=pltpu.CompilerParams(
            dimension_semantics=("parallel",),
            vmem_limit_bytes=vmem_limit,
        ),
        cost_estimate=cost,
    )(alpha_s, xp, w1_bf16, b1_2d, w2_bf16, b2_2d)

    return out_padded if Bp == B else out_padded[:B]


def reference_f32(x, w1, b1, alpha, w2, b2):
    h = x @ w1 + b1
    h = jnp.where(h > 0, h, alpha * h)
    return h @ w2 + b2


def reference_bf16(x, w1, b1, alpha, w2, b2):
    # Emulates the kernel's bf16-MXU / f32-accumulate numerics.
    h = jnp.dot(x.astype(jnp.bfloat16), w1.astype(jnp.bfloat16),
                preferred_element_type=jnp.float32) + b1
    h = jnp.where(h > 0, h, alpha * h)
    out = jnp.dot(h.astype(jnp.bfloat16), w2.astype(jnp.bfloat16),
                  preferred_element_type=jnp.float32) + b2
    return out


if __name__ == "__main__":
    # Small shapes consistent with the module: fc(input_size->input_size),
    # PReLU, Dropout, fc(input_size->output_dim).
    B, input_size, output_dim = 8, 32, 16

    key = jax.random.PRNGKey(0)
    kx, kw1, kb1, kw2, kb2 = jax.random.split(key, 5)

    x = jax.random.normal(kx, (B, input_size), dtype=jnp.float32)

    # Deterministic parameter init (uniform, PyTorch-Linear-like scale).
    lim1 = 1.0 / jnp.sqrt(input_size)
    w1 = jax.random.uniform(kw1, (input_size, input_size), jnp.float32, -lim1, lim1)
    b1 = jax.random.uniform(kb1, (input_size,), jnp.float32, -lim1, lim1)
    w2 = jax.random.uniform(kw2, (input_size, output_dim), jnp.float32, -lim1, lim1)
    b2 = jax.random.uniform(kb2, (output_dim,), jnp.float32, -lim1, lim1)
    alpha = jnp.array(0.25, dtype=jnp.float32)  # PReLU default init

    # Prepare (cast/reshape) the parameters once; reuse across calls.
    params = prepare_params(w1, b1, w2, b2)

    out = target_embedding_net(x, alpha, params)
    out = jax.block_until_ready(out)
    assert out.shape == (B, output_dim)

    # Tight check against a reference with matching bf16-MXU numerics.
    ref_bf16 = reference_bf16(x, w1, b1, alpha, w2, b2)
    assert jnp.allclose(out, ref_bf16, atol=1e-3, rtol=1e-3), "mismatch vs bf16 reference"

    # Looser check against the pure-f32 PyTorch-equivalent reference
    # (bf16 MXU inputs introduce ~1e-3-scale quantization error).
    ref_f32 = reference_f32(x, w1, b1, alpha, w2, b2)
    assert jnp.allclose(out, ref_f32, atol=5e-2, rtol=5e-2), "mismatch vs f32 reference"

    print("KERNEL_OK")
</pallas_src>

<mosaic_0001>
module attributes {stable_mosaic.version = 11 : i64} {
  func.func @_mlp_kernel(%arg0: i32, %arg1: memref<1xf32, #tpu.memory_space<smem>>, %arg2: memref<8x32xf32, #tpu.memory_space<vmem>>, %arg3: memref<32x32xbf16, #tpu.memory_space<vmem>>, %arg4: memref<1x32xf32, #tpu.memory_space<vmem>>, %arg5: memref<32x16xbf16, #tpu.memory_space<vmem>>, %arg6: memref<1x16xf32, #tpu.memory_space<vmem>>, %arg7: memref<8x16xf32, #tpu.memory_space<vmem>>) attributes {dimension_semantics = [#tpu.dimension_semantics<parallel>], iteration_bounds = array<i64: 1>, scalar_prefetch = 0 : i64, scratch_operands = 0 : i64, tpu.core_type = #tpu.core_type<tc>, window_params = [{transform_indices = @transform_0, window_bounds = array<i64: 1>}, {transform_indices = @transform_1, window_bounds = array<i64: 8, 32>}, {pipeline_mode = #tpu.pipeline_mode<synchronous>, transform_indices = @transform_2, window_bounds = array<i64: 32, 32>}, {pipeline_mode = #tpu.pipeline_mode<synchronous>, transform_indices = @transform_3, window_bounds = array<i64: 1, 32>}, {pipeline_mode = #tpu.pipeline_mode<synchronous>, transform_indices = @transform_4, window_bounds = array<i64: 32, 16>}, {pipeline_mode = #tpu.pipeline_mode<synchronous>, transform_indices = @transform_5, window_bounds = array<i64: 1, 16>}, {transform_indices = @transform_6, window_bounds = array<i64: 8, 16>}]} {
    %c0 = arith.constant 0 : index
    %c0_0 = arith.constant 0 : index
    %0 = vector.load %arg2[%c0, %c0_0] : memref<8x32xf32, #tpu.memory_space<vmem>>, vector<8x32xf32>
    %1 = arith.truncf %0 : vector<8x32xf32> to vector<8x32xbf16>
    %c0_1 = arith.constant 0 : index
    %c0_2 = arith.constant 0 : index
    %2 = vector.load %arg3[%c0_1, %c0_2] : memref<32x32xbf16, #tpu.memory_space<vmem>>, vector<32x32xbf16>
    %cst = arith.constant dense<0.000000e+00> : vector<8x32xf32>
    %3 = tpu.matmul %1, %2, %cst {dimension_numbers = #tpu.dot_dimension_numbers<[1], [0], [0], [1], [0, 0, 1, 1], [], []>} : vector<8x32xbf16>, vector<32x32xbf16>, vector<8x32xf32> -> vector<8x32xf32>
    %c0_3 = arith.constant 0 : index
    %c0_4 = arith.constant 0 : index
    %4 = vector.load %arg4[%c0_3, %c0_4] : memref<1x32xf32, #tpu.memory_space<vmem>>, vector<1x32xf32>
    %5 = vector.broadcast %4 : vector<1x32xf32> to vector<8x32xf32>
    %6 = arith.addf %3, %5 : vector<8x32xf32>
    %c0_5 = arith.constant 0 : index
    %7 = memref.load %arg1[%c0_5] : memref<1xf32, #tpu.memory_space<smem>>
    %cst_6 = arith.constant 0.000000e+00 : f32
    %8 = vector.broadcast %cst_6 : f32 to vector<8x32xf32>
    %9 = arith.cmpf ogt, %6, %8 : vector<8x32xf32>
    %10 = vector.broadcast %7 : f32 to vector<8x32xf32>
    %11 = arith.mulf %10, %6 : vector<8x32xf32>
    %12 = arith.select %9, %6, %11 : vector<8x32xi1>, vector<8x32xf32>
    %13 = arith.truncf %12 : vector<8x32xf32> to vector<8x32xbf16>
    %c0_7 = arith.constant 0 : index
    %c0_8 = arith.constant 0 : index
    %14 = vector.load %arg5[%c0_7, %c0_8] : memref<32x16xbf16, #tpu.memory_space<vmem>>, vector<32x16xbf16>
    %cst_9 = arith.constant dense<0.000000e+00> : vector<8x16xf32>
    %15 = tpu.matmul %13, %14, %cst_9 {dimension_numbers = #tpu.dot_dimension_numbers<[1], [0], [0], [1], [0, 0, 1, 1], [], []>} : vector<8x32xbf16>, vector<32x16xbf16>, vector<8x16xf32> -> vector<8x16xf32>
    %c0_10 = arith.constant 0 : index
    %c0_11 = arith.constant 0 : index
    %16 = vector.load %arg6[%c0_10, %c0_11] : memref<1x16xf32, #tpu.memory_space<vmem>>, vector<1x16xf32>
    %17 = vector.broadcast %16 : vector<1x16xf32> to vector<8x16xf32>
    %18 = arith.addf %15, %17 : vector<8x16xf32>
    %c0_12 = arith.constant 0 : index
    %c0_13 = arith.constant 0 : index
    %19 = vector.load %arg7[%c0_12, %c0_13] : memref<8x16xf32, #tpu.memory_space<vmem>>, vector<8x16xf32>
    tpu.vector_store %arg7[%c0_12, %c0_13], %18 {strides = array<i32>} : memref<8x16xf32, #tpu.memory_space<vmem>>, vector<8x16xf32>,
    return
  }
  func.func @transform_0(%arg0: i32) -> i32 {
    %c0_i32 = arith.constant 0 : i32
    %c0_i32_0 = arith.constant 0 : i32
    return %c0_i32 : i32
  }
  func.func @transform_1(%arg0: i32) -> (i32, i32) {
    %c0_i32 = arith.constant 0 : i32
    %c0_i32_0 = arith.constant 0 : i32
    return %arg0, %c0_i32 : i32, i32
  }
  func.func @transform_2(%arg0: i32) -> (i32, i32) {
    %c0_i32 = arith.constant 0 : i32
    %c0_i32_0 = arith.constant 0 : i32
    %c0_i32_1 = arith.constant 0 : i32
    return %c0_i32, %c0_i32_0 : i32, i32
  }
  func.func @transform_3(%arg0: i32) -> (i32, i32) {
    %c0_i32 = arith.constant 0 : i32
    %c0_i32_0 = arith.constant 0 : i32
    %c0_i32_1 = arith.constant 0 : i32
    return %c0_i32, %c0_i32_0 : i32, i32
  }
  func.func @transform_4(%arg0: i32) -> (i32, i32) {
    %c0_i32 = arith.constant 0 : i32
    %c0_i32_0 = arith.constant 0 : i32
    %c0_i32_1 = arith.constant 0 : i32
    return %c0_i32, %c0_i32_0 : i32, i32
  }
  func.func @transform_5(%arg0: i32) -> (i32, i32) {
    %c0_i32 = arith.constant 0 : i32
    %c0_i32_0 = arith.constant 0 : i32
    %c0_i32_1 = arith.constant 0 : i32
    return %c0_i32, %c0_i32_0 : i32, i32
  }
  func.func @transform_6(%arg0: i32) -> (i32, i32) {
    %c0_i32 = arith.constant 0 : i32
    %c0_i32_0 = arith.constant 0 : i32
    return %arg0, %c0_i32 : i32, i32
  }
}

</mosaic_0001>

<llo_original>
// kernel: tpu_custom_call.1
$region0: #{tpu_custom_call.1}
  #allocation0 [shape = 'u32[]', space=smem, size = 0x4, offset = 0x4, fixed_abs, tag = 'smem constant byte address 0x4 - core index']
  #allocation1 [shape = 'u32[144,128]{1,0:T(1,128)}', space=vmem, size = 0x12000, scoped, tag = 'internal scratch']
  #allocation2 [shape = 'f32[1]{0:T(128)S(6)}', space=smem, size = 0x200, scoped, tag = 'scoped memory for tpu_custom_call.1']
  %s0 = inlined_call_operand.<no memory space> [shape: f32[1], index: 0, kind: input, shape index: {}]
  %s1 = inlined_call_operand.vmem [shape: f32[8,32], index: 1, kind: input, shape index: {}]
  %s2 = inlined_call_operand.vmem [shape: bf16[32,32], index: 2, kind: input, shape index: {}]
  %s3 = inlined_call_operand.vmem [shape: f32[1,32], index: 3, kind: input, shape index: {}]
  %s4 = inlined_call_operand.vmem [shape: bf16[32,16], index: 4, kind: input, shape index: {}]
  %s5 = inlined_call_operand.vmem [shape: f32[1,16], index: 5, kind: input, shape index: {}]
  %s6 = inlined_call_operand.hbm [shape: f32[8,16], index: 6, kind: output, shape index: {}]
  %s7 = sld [smem:[#allocation0]]
  $region34: #{tpu_custom_call.1} parent=0
    _
  %s9 = ssub.s32 1, %s7
  %s10 = scalar_select 0, %s9, %s7
  %11 = sst [smem:[#allocation2]] %s0
  $region1: #{tpu_custom_call.1} parent=0
    #allocation3 [shape = 'u8[4096]{0}', space=vmem, size = 0x1000, scoped, tag = 'output window, operand 0, single buffered']
    #allocation4 [shape = 's32[1]{0}', space=sflag, size = 0x4, scoped, tag = 'scoped memory for tpu_custom_call.1']
    %12 = vsyncpa [#allocation4], 0
    // Predicated region
    $region2: #{tpu_custom_call.1} parent=1 // pred_check
      _
    $region3: #{tpu_custom_call.1} parent=1 // pred_check_branch
      %14 = sbr.rel (0) target = $region5
    $region4: #{tpu_custom_call.1} parent=1 // pred_region
      _
    $region5: #{tpu_custom_call.1} parent=1 // pred_fallthru
      _
    // Predicated region
    $region6: #{tpu_custom_call.1} parent=1 // pred_check
      _
    $region7: #{tpu_custom_call.1} parent=1 // pred_check_branch
      %16 = sbr.rel (0) target = $region9
    $region8: #{tpu_custom_call.1} parent=1 // pred_region
      _
    $region9: #{tpu_custom_call.1} parent=1 // pred_fallthru
      _
    // Predicated region
    $region10: #{tpu_custom_call.1} parent=1 // pred_check
      _
    $region11: #{tpu_custom_call.1} parent=1 // pred_check_branch
      %18 = sbr.rel (0) target = $region13
    $region12: #{tpu_custom_call.1} parent=1 // pred_region
      _
    $region13: #{tpu_custom_call.1} parent=1 // pred_fallthru
      _
    // Predicated region
    $region14: #{tpu_custom_call.1} parent=1 // pred_check
      _
    $region15: #{tpu_custom_call.1} parent=1 // pred_check_branch
      %20 = sbr.rel (0) target = $region17
    $region16: #{tpu_custom_call.1} parent=1 // pred_region
      _
    $region17: #{tpu_custom_call.1} parent=1 // pred_fallthru
      _
    // Predicated region
    $region18: #{tpu_custom_call.1} parent=1 // pred_check
      _
    $region19: #{tpu_custom_call.1} parent=1 // pred_check_branch
      %22 = sbr.rel (0) target = $region21
    $region20: #{tpu_custom_call.1} parent=1 // pred_region
      _
    $region21: #{tpu_custom_call.1} parent=1 // pred_fallthru
      _
    // Predicated region
    $region22: #{tpu_custom_call.1} parent=1 // pred_check
      _
    $region23: #{tpu_custom_call.1} parent=1 // pred_check_branch
      %24 = sbr.rel (0) target = $region25
    $region24: #{tpu_custom_call.1} parent=1 // pred_region
      _
    $region25: #{tpu_custom_call.1} parent=1 // pred_fallthru
      _
    %v26 = vld [vmem:[%s1] sm:$0xff]
    %v27 = vpack.c.bf16 %v26, %v26
    %v28 = vld [vmem:[%s2] sm:$0xf]
    %v29 = vld [vmem:[%s2 + $0x4] sm:$0xf]
    %v30 = vld [vmem:[%s2 + $0x8] sm:$0xf]
    %v31 = vld [vmem:[%s2 + $0xc] sm:$0xf]
    %v32 = vld [vmem:[%s3] sm:$0x1]
    %v34 = vlaneseq
    %v35 = vshrl.u32 %v34, 7
    %v36 = vsub.s32 0, %v35
    %v37 = vrot.slane %v32, %v36
    %v43 = vunpack.c.l.b16 %v28
    %v44 = vunpack.c.l.b16 %v29
    %v45 = vunpack.c.l.b16 %v30
    %v46 = vunpack.c.l.b16 %v31
    %v47 = vpack.c.b16 %v44, %v43
    %v48 = vpack.c.b16 %v46, %v45
    %vm51 = vcmask 261120
    %v53 = vsel %vm51, %v27, 0
    %55 = vmatprep.subr.bf16.mxu0 0
    %56 = vmatpush1.bf16.msra.mxu0 0
    %57 = vmatprep.subr.bf16.mxu0 0
    %58 = vmatpush1.bf16.msra.mxu0 0
    %59 = vmatprep.subr.bf16.mxu0 0
    %60 = vmatpush1.bf16.msra.mxu0 0
    %61 = vmatprep.subr.bf16.mxu0 0
    %62 = vmatpush1.bf16.msra.mxu0 0
    %63 = vmatprep.subr.bf16.mxu0 0
    %64 = vmatpush1.bf16.msra.mxu0 0
    %65 = vmatprep.subr.bf16.mxu0 0
    %66 = vmatpush1.bf16.msra.mxu0 0
    %67 = vmatprep.subr.bf16.mxu0 0
    %68 = vmatpush1.bf16.msra.mxu0 %v48
    %69 = vmatprep.subr.bf16.mxu0 0
    %70 = vmatpush1.bf16.msra.mxu0 %v47
    %71 = vmatprep.subr.bf16.mxu0 0
    %72 = vmatpush2.bf16.msra.mxu0 0
    %73 = vmatprep.subr.bf16.mxu0 0
    %74 = vmatpush2.bf16.msra.mxu0 0
    %75 = vmatprep.subr.bf16.mxu0 0
    %76 = vmatpush2.bf16.msra.mxu0 0
    %77 = vmatprep.subr.bf16.mxu0 0
    %78 = vmatpush2.bf16.msra.mxu0 0
    %79 = vmatprep.subr.bf16.mxu0 0
    %80 = vmatpush2.bf16.msra.mxu0 0
    %81 = vmatprep.subr.bf16.mxu0 0
    %82 = vmatpush2.bf16.msra.mxu0 0
    %83 = vmatprep.subr.bf16.mxu0 0
    %84 = vmatpush2.bf16.msra.mxu0 0
    %85 = vmatprep.subr.bf16.mxu0 0
    %86 = vmatpush2.bf16.msra.mxu0 0
    %87 = vmatprep.mubr.bf16.mxu0 0
    %88 = vmatmul.mubr.bf16.gmra.mxu0 %v53
    %v89 = vpop.f32.mrf.mxu0
    %v90 = vadd.f32 %v37, %v89
    %v91 = vpop.f32.mrf.mxu0
    %v92 = vpop.f32.mrf.mxu0
    %v93 = vpop.f32.mrf.mxu0
    %94 = vdwg.mxu0
    %s95 = sld [smem:[#allocation2]]
    %vm96 = vcmp.gt.f32.partialorder %v90, 0.0
    %v97 = vstv %s95
    %v98 = vmul.f32 %v97, %v90
    %v99 = vsel %vm96, %v90, %v98
    %v100 = vpack.c.bf16 %v99, %v99
    %v101 = vld [vmem:[%s4] sm:$0xf]
    %v102 = vld [vmem:[%s4 + $0x4] sm:$0xf]
    %v103 = vld [vmem:[%s4 + $0x8] sm:$0xf]
    %v104 = vld [vmem:[%s4 + $0xc] sm:$0xf]
    %v105 = vld [vmem:[%s5] sm:$0x1]
    %v107 = vlaneseq
    %v108 = vshrl.u32 %v107, 7
    %v109 = vsub.s32 0, %v108
    %v110 = vrot.slane %v105, %v109
    %v116 = vunpack.c.l.b16 %v101
    %v117 = vunpack.c.l.b16 %v102
    %v118 = vunpack.c.l.b16 %v103
    %v119 = vunpack.c.l.b16 %v104
    %v120 = vpack.c.b16 %v117, %v116
    %v121 = vpack.c.b16 %v119, %v118
    %v125 = vsel %vm51, %v100, 0
    %127 = vmatprep.subr.bf16.mxu0 0
    %128 = vmatpush1.bf16.msra.mxu0 0
    %129 = vmatprep.subr.bf16.mxu0 0
    %130 = vmatpush1.bf16.msra.mxu0 0
    %131 = vmatprep.subr.bf16.mxu0 0
    %132 = vmatpush1.bf16.msra.mxu0 0
    %133 = vmatprep.subr.bf16.mxu0 0
    %134 = vmatpush1.bf16.msra.mxu0 0
    %135 = vmatprep.subr.bf16.mxu0 0
    %136 = vmatpush1.bf16.msra.mxu0 0
    %137 = vmatprep.subr.bf16.mxu0 0
    %138 = vmatpush1.bf16.msra.mxu0 0
    %139 = vmatprep.subr.bf16.mxu0 0
    %140 = vmatpush1.bf16.msra.mxu0 %v121
    %141 = vmatprep.subr.bf16.mxu0 0
    %142 = vmatpush1.bf16.msra.mxu0 %v120
    %143 = vmatprep.subr.bf16.mxu0 0
    %144 = vmatpush2.bf16.msra.mxu0 0
    %145 = vmatprep.subr.bf16.mxu0 0
    %146 = vmatpush2.bf16.msra.mxu0 0
    %147 = vmatprep.subr.bf16.mxu0 0
    %148 = vmatpush2.bf16.msra.mxu0 0
    %149 = vmatprep.subr.bf16.mxu0 0
    %150 = vmatpush2.bf16.msra.mxu0 0
    %151 = vmatprep.subr.bf16.mxu0 0
    %152 = vmatpush2.bf16.msra.mxu0 0
    %153 = vmatprep.subr.bf16.mxu0 0
    %154 = vmatpush2.bf16.msra.mxu0 0
    %155 = vmatprep.subr.bf16.mxu0 0
    %156 = vmatpush2.bf16.msra.mxu0 0
    %157 = vmatprep.subr.bf16.mxu0 0
    %158 = vmatpush2.bf16.msra.mxu0 0
    %159 = vmatprep.mubr.bf16.mxu0 0
    %160 = vmatmul.mubr.bf16.gmra.mxu0 %v125
    %v161 = vpop.f32.mrf.mxu0
    %v162 = vadd.f32 %v110, %v161
    %v163 = vpop.f32.mrf.mxu0
    %v164 = vpop.f32.mrf.mxu0
    %v165 = vpop.f32.mrf.mxu0
    %166 = vdwg.mxu0
    %vm167 = vcmask 130048
    %168 = vst.msk [vmem:[#allocation3] sm:$0xff] %vm167, %v162
    // Predicated region
    $region26: #{tpu_custom_call.1} parent=1 // pred_check
      _
    $region27: #{tpu_custom_call.1} parent=1 // pred_check_branch
      %170 = sbr.rel (0) target = $region29
    $region28: #{tpu_custom_call.1} parent=1 // pred_region
      %s172 = ssub.s32 128, 128
      %173 = vsyncadd [#allocation4], %s172
      %s175 = sshll.u32 [#allocation3], 4
      %s176 = int_to_ptr.vmem [resolvable:$true] %s175
      %178 = dma.vmem_to_hbm [thread:$0]  %s176, 128, %s6, [#allocation4]
    $region29: #{tpu_custom_call.1} parent=1 // pred_fallthru
      _
    // Predicated region
    $region30: #{tpu_custom_call.1} parent=1 // pred_check
      _
    $region31: #{tpu_custom_call.1} parent=1 // pred_check_branch
      %180 = sbr.rel (0) target = $region33
    $region32: #{tpu_custom_call.1} parent=1 // pred_region
      %181 = dma.done [#allocation4], 128
    $region33: #{tpu_custom_call.1} parent=1 // pred_fallthru
      _
    %182 = vsyncpa [#allocation4], 1

</llo_original>
